<compile_context>
chip_gen: v6e
topology: v6e:2x2x1
jax: 0.10.0
libtpu: 0.0.40
codegen_flags: <defaults>
</compile_context>

<pallas_src>
import functools

import jax
import jax.numpy as jnp
from jax.experimental import pallas as pl
from jax.experimental.pallas import tpu as pltpu


def _ln_relu_linear_t(h, gamma, beta, w_t, b, eps):
    """Transposed-layout LayerNorm (features on sublanes) -> ReLU -> Linear.

    h: (P_in, TN);  gamma/beta: (P_in, 1);  w_t: (P_out, P_in);  b: (P_out, 1).
    """
    mu = jnp.mean(h, axis=0, keepdims=True)                       # (1, TN)
    var = jnp.mean(jnp.square(h - mu), axis=0, keepdims=True)     # (1, TN)
    h = (h - mu) * jax.lax.rsqrt(var + eps)
    h = h * gamma + beta
    h = jnp.maximum(h, 0.0)
    return jnp.dot(w_t, h, preferred_element_type=jnp.float32) + b


def _dpb_kernel(x_ref, wm_ref, vec_ref, o_ref, *, P, H, eps):
    # x_ref:   (2, TN)        biases, transposed: N on the lane axis
    # wm_ref:  (3P + H, Wm)   row-stacked transposed weights (out, in)
    # vec_ref: (Wv, 10)       column-stacked b0,g1,be1,b1,g2,be2,b2,g3,be3,b3
    # o_ref:   (H, TN)        lane-dense output tile
    x = x_ref[...].astype(jnp.float32)                            # (2, TN)

    wm = wm_ref[...]                                              # tiny, single load
    w0t = wm[0 * P:1 * P, 0:2]                                    # (P, 2)
    w1t = wm[1 * P:2 * P, 0:P]                                    # (P, P)
    w2t = wm[2 * P:3 * P, 0:P]                                    # (P, P)
    w3t = wm[3 * P:3 * P + H, 0:P]                                # (H, P)

    vec = vec_ref[...]                                            # (Wv, 10)
    b0 = vec[0:P, 0:1]
    g1, be1, b1 = vec[0:P, 1:2], vec[0:P, 2:3], vec[0:P, 3:4]
    g2, be2, b2 = vec[0:P, 4:5], vec[0:P, 5:6], vec[0:P, 6:7]
    g3, be3 = vec[0:P, 7:8], vec[0:P, 8:9]
    b3 = vec[0:H, 9:10]

    # pos_proj: Linear(2, P) as two broadcast outer-products (K=2 MXU matmul is
    # degenerate; keep it on the VPU).
    h = w0t[:, 0:1] * x[0:1, :] + w0t[:, 1:2] * x[1:2, :] + b0    # (P, TN)

    h = _ln_relu_linear_t(h, g1, be1, w1t, b1, eps)               # pos1
    h = _ln_relu_linear_t(h, g2, be2, w2t, b2, eps)               # pos2
    h = _ln_relu_linear_t(h, g3, be3, w3t, b3, eps)               # pos3 -> (H, TN)

    o_ref[...] = h.astype(o_ref.dtype)                            # single cast, unmasked vst


def _round_up(x, m):
    return (x + m - 1) // m * m


def dynamic_pos_bias_forward(biases, params, *, eps=1e-5, out_dtype=None):
    """biases: (N, 2); params: f32 weights with Linear weights stored as
    (in_features, out_features).  Returns (N, num_heads)."""
    N, two = biases.shape
    assert two == 2
    P = params["w0"].shape[1]
    H = params["w3"].shape[1]
    out_dtype = out_dtype or biases.dtype

    # Grid choice per review: one step for N in the hundreds (single-TC v5e/v6e,
    # per-step overhead ~0.35 us); 512-wide "parallel" tiles only for large N
    # so v7x dual-TC sharding can kick in.
    Np = _round_up(N, 128)
    if Np <= 1024:
        tile_n = Np
    else:
        tile_n = 512
        Np = _round_up(N, tile_n)

    # Biases transposed to (2, Np): N on the lane axis, zero-padded tail lanes
    # (padded lanes see h = b0; LN variance is generically nonzero and eps > 0
    # guards the degenerate case; padded lanes are sliced off at the end).
    x = jnp.asarray(biases, jnp.float32).T
    if Np != N:
        x = jnp.pad(x, ((0, 0), (0, Np - N)))

    # --- parameter slab 1: row-stacked transposed weight matrices (out, in) ---
    Wm = max(2, P)

    def pad_wt(w):
        wt = jnp.asarray(w, jnp.float32).T                        # (out, in)
        return jnp.pad(wt, ((0, 0), (0, Wm - wt.shape[1])))

    wm = jnp.concatenate(
        [pad_wt(params["w0"]), pad_wt(params["w1"]),
         pad_wt(params["w2"]), pad_wt(params["w3"])], axis=0)     # (3P + H, Wm)

    # --- parameter slab 2: column-stacked bias/gamma/beta vectors ---
    Wv = max(P, H)

    def col(v):
        v = jnp.asarray(v, jnp.float32)
        return jnp.pad(v, (0, Wv - v.shape[0])).reshape(Wv, 1)

    vec = jnp.concatenate(
        [col(params["b0"]),
         col(params["g1"]), col(params["be1"]), col(params["b1"]),
         col(params["g2"]), col(params["be2"]), col(params["b2"]),
         col(params["g3"]), col(params["be3"]),
         col(params["b3"])], axis=1)                              # (Wv, 10)

    grid = (Np // tile_n,)
    out_t = pl.pallas_call(
        functools.partial(_dpb_kernel, P=P, H=H, eps=eps),
        out_shape=jax.ShapeDtypeStruct((H, Np), out_dtype),
        grid_spec=pltpu.PrefetchScalarGridSpec(
            num_scalar_prefetch=0,
            grid=grid,
            in_specs=[
                pl.BlockSpec((2, tile_n), lambda i: (0, i)),      # biases tile
                pl.BlockSpec(wm.shape, lambda i: (0, 0)),         # weight slab (resident)
                pl.BlockSpec(vec.shape, lambda i: (0, 0)),        # vector slab (resident)
            ],
            out_specs=pl.BlockSpec((H, tile_n), lambda i: (0, i)),
        ),
        compiler_params=pltpu.CompilerParams(
            dimension_semantics=("parallel",),
        ),
    )(x, wm, vec)

    # Cheap XLA-side transpose back to the PyTorch (N, H) layout.
    return out_t.T[:N]


def dynamic_pos_bias_reference(biases, params, eps=1e-5):
    """Pure-JAX reference matching the PyTorch module."""
    def ln(x, g, b):
        mu = jnp.mean(x, axis=-1, keepdims=True)
        var = jnp.mean(jnp.square(x - mu), axis=-1, keepdims=True)
        return (x - mu) * jax.lax.rsqrt(var + eps) * g + b

    h = biases @ params["w0"] + params["b0"]
    h = jnp.maximum(ln(h, params["g1"], params["be1"]), 0.0) @ params["w1"] + params["b1"]
    h = jnp.maximum(ln(h, params["g2"], params["be2"]), 0.0) @ params["w2"] + params["b2"]
    h = jnp.maximum(ln(h, params["g3"], params["be3"]), 0.0) @ params["w3"] + params["b3"]
    return h


if __name__ == "__main__":
    key = jax.random.PRNGKey(0)

    dim, num_heads = 32, 4
    pos_dim = dim // 4          # 8
    Gh = Gw = 8                 # group size -> N = (2*8-1)^2 = 225 relative positions

    # Relative-coordinate table, as DynamicPosBias is fed in the original arch.
    ph = jnp.arange(1 - Gh, Gh, dtype=jnp.float32)
    pw = jnp.arange(1 - Gw, Gw, dtype=jnp.float32)
    bh, bw = jnp.meshgrid(ph, pw, indexing="ij")
    biases = jnp.stack([bh.reshape(-1), bw.reshape(-1)], axis=-1)  # (225, 2)

    keys = jax.random.split(key, 5)

    def lin(k, fan_in, fan_out):
        # PyTorch nn.Linear default init: U(-1/sqrt(fan_in), 1/sqrt(fan_in)).
        bound = 1.0 / (fan_in ** 0.5)
        kw_, kb_ = jax.random.split(k)
        w = jax.random.uniform(kw_, (fan_in, fan_out), jnp.float32, -bound, bound)
        b = jax.random.uniform(kb_, (fan_out,), jnp.float32, -bound, bound)
        return w, b

    w0, b0 = lin(keys[0], 2, pos_dim)
    w1, b1 = lin(keys[1], pos_dim, pos_dim)
    w2, b2 = lin(keys[2], pos_dim, pos_dim)
    w3, b3 = lin(keys[3], pos_dim, num_heads)
    ka, kb = jax.random.split(keys[4])
    gammas = 1.0 + 0.1 * jax.random.normal(ka, (3, pos_dim), jnp.float32)
    betas = 0.1 * jax.random.normal(kb, (3, pos_dim), jnp.float32)

    params = dict(
        w0=w0, b0=b0,
        g1=gammas[0], be1=betas[0], w1=w1, b1=b1,
        g2=gammas[1], be2=betas[1], w2=w2, b2=b2,
        g3=gammas[2], be3=betas[2], w3=w3, b3=b3,
    )

    out = dynamic_pos_bias_forward(biases, params)
    out = jax.block_until_ready(out)

    ref = dynamic_pos_bias_reference(biases, params)
    assert out.shape == (biases.shape[0], num_heads) and out.dtype == biases.dtype
    assert jnp.allclose(out, ref, atol=1e-4, rtol=1e-4), "mismatch vs reference"

    print("KERNEL_OK")
</pallas_src>

<mosaic_0001>
module attributes {stable_mosaic.version = 11 : i64} {
  func.func @_dpb_kernel(%arg0: i32, %arg1: memref<2x256xf32, #tpu.memory_space<vmem>>, %arg2: memref<28x8xf32, #tpu.memory_space<vmem>>, %arg3: memref<8x10xf32, #tpu.memory_space<vmem>>, %arg4: memref<4x256xf32, #tpu.memory_space<vmem>>) attributes {dimension_semantics = [#tpu.dimension_semantics<parallel>], iteration_bounds = array<i64: 1>, scalar_prefetch = 0 : i64, scratch_operands = 0 : i64, tpu.core_type = #tpu.core_type<tc>, window_params = [{transform_indices = @transform_0, window_bounds = array<i64: 2, 256>}, {pipeline_mode = #tpu.pipeline_mode<synchronous>, transform_indices = @transform_1, window_bounds = array<i64: 28, 8>}, {pipeline_mode = #tpu.pipeline_mode<synchronous>, transform_indices = @transform_2, window_bounds = array<i64: 8, 10>}, {transform_indices = @transform_3, window_bounds = array<i64: 4, 256>}]} {
    %c0 = arith.constant 0 : index
    %c0_0 = arith.constant 0 : index
    %0 = vector.load %arg1[%c0, %c0_0] : memref<2x256xf32, #tpu.memory_space<vmem>>, vector<2x256xf32>
    %c0_1 = arith.constant 0 : index
    %c0_2 = arith.constant 0 : index
    %1 = vector.load %arg2[%c0_1, %c0_2] : memref<28x8xf32, #tpu.memory_space<vmem>>, vector<28x8xf32>
    %2 = vector.extract_strided_slice %1 {offsets = [0, 0], sizes = [8, 2], strides = [1, 1]} : vector<28x8xf32> to vector<8x2xf32>
    %3 = vector.extract_strided_slice %1 {offsets = [8, 0], sizes = [8, 8], strides = [1, 1]} : vector<28x8xf32> to vector<8x8xf32>
    %4 = vector.extract_strided_slice %1 {offsets = [16, 0], sizes = [8, 8], strides = [1, 1]} : vector<28x8xf32> to vector<8x8xf32>
    %5 = vector.extract_strided_slice %1 {offsets = [24, 0], sizes = [4, 8], strides = [1, 1]} : vector<28x8xf32> to vector<4x8xf32>
    %c0_3 = arith.constant 0 : index
    %c0_4 = arith.constant 0 : index
    %6 = vector.load %arg3[%c0_3, %c0_4] : memref<8x10xf32, #tpu.memory_space<vmem>>, vector<8x10xf32>
    %7 = vector.extract_strided_slice %6 {offsets = [0, 0], sizes = [8, 1], strides = [1, 1]} : vector<8x10xf32> to vector<8x1xf32>
    %8 = vector.extract_strided_slice %6 {offsets = [0, 1], sizes = [8, 1], strides = [1, 1]} : vector<8x10xf32> to vector<8x1xf32>
    %9 = vector.extract_strided_slice %6 {offsets = [0, 2], sizes = [8, 1], strides = [1, 1]} : vector<8x10xf32> to vector<8x1xf32>
    %10 = vector.extract_strided_slice %6 {offsets = [0, 3], sizes = [8, 1], strides = [1, 1]} : vector<8x10xf32> to vector<8x1xf32>
    %11 = vector.extract_strided_slice %6 {offsets = [0, 4], sizes = [8, 1], strides = [1, 1]} : vector<8x10xf32> to vector<8x1xf32>
    %12 = vector.extract_strided_slice %6 {offsets = [0, 5], sizes = [8, 1], strides = [1, 1]} : vector<8x10xf32> to vector<8x1xf32>
    %13 = vector.extract_strided_slice %6 {offsets = [0, 6], sizes = [8, 1], strides = [1, 1]} : vector<8x10xf32> to vector<8x1xf32>
    %14 = vector.extract_strided_slice %6 {offsets = [0, 7], sizes = [8, 1], strides = [1, 1]} : vector<8x10xf32> to vector<8x1xf32>
    %15 = vector.extract_strided_slice %6 {offsets = [0, 8], sizes = [8, 1], strides = [1, 1]} : vector<8x10xf32> to vector<8x1xf32>
    %16 = vector.extract_strided_slice %6 {offsets = [0, 9], sizes = [4, 1], strides = [1, 1]} : vector<8x10xf32> to vector<4x1xf32>
    %17 = vector.extract_strided_slice %2 {offsets = [0, 0], sizes = [8, 1], strides = [1, 1]} : vector<8x2xf32> to vector<8x1xf32>
    %18 = vector.extract_strided_slice %0 {offsets = [0, 0], sizes = [1, 256], strides = [1, 1]} : vector<2x256xf32> to vector<1x256xf32>
    %19 = vector.broadcast %17 : vector<8x1xf32> to vector<8x256xf32>
    %20 = vector.broadcast %18 : vector<1x256xf32> to vector<8x256xf32>
    %21 = arith.mulf %19, %20 : vector<8x256xf32>
    %22 = vector.extract_strided_slice %2 {offsets = [0, 1], sizes = [8, 1], strides = [1, 1]} : vector<8x2xf32> to vector<8x1xf32>
    %23 = vector.extract_strided_slice %0 {offsets = [1, 0], sizes = [1, 256], strides = [1, 1]} : vector<2x256xf32> to vector<1x256xf32>
    %24 = vector.broadcast %22 : vector<8x1xf32> to vector<8x256xf32>
    %25 = vector.broadcast %23 : vector<1x256xf32> to vector<8x256xf32>
    %26 = arith.mulf %24, %25 : vector<8x256xf32>
    %27 = arith.addf %21, %26 : vector<8x256xf32>
    %28 = vector.broadcast %7 : vector<8x1xf32> to vector<8x256xf32>
    %29 = arith.addf %27, %28 : vector<8x256xf32>
    %cst = arith.constant dense<0.000000e+00> : vector<256xf32>
    %30 = vector.multi_reduction <add>, %29, %cst [0] : vector<8x256xf32> to vector<256xf32>
    %31 = vector.shape_cast %30 : vector<256xf32> to vector<1x256xf32>
    %cst_5 = arith.constant 8.000000e+00 : f32
    %32 = vector.broadcast %cst_5 : f32 to vector<1x256xf32>
    %33 = arith.divf %31, %32 : vector<1x256xf32>
    %34 = vector.broadcast %33 : vector<1x256xf32> to vector<8x256xf32>
    %35 = arith.subf %29, %34 : vector<8x256xf32>
    %36 = arith.mulf %35, %35 : vector<8x256xf32>
    %cst_6 = arith.constant dense<0.000000e+00> : vector<256xf32>
    %37 = vector.multi_reduction <add>, %36, %cst_6 [0] : vector<8x256xf32> to vector<256xf32>
    %38 = vector.shape_cast %37 : vector<256xf32> to vector<1x256xf32>
    %cst_7 = arith.constant 8.000000e+00 : f32
    %39 = vector.broadcast %cst_7 : f32 to vector<1x256xf32>
    %40 = arith.divf %38, %39 : vector<1x256xf32>
    %41 = vector.broadcast %33 : vector<1x256xf32> to vector<8x256xf32>
    %42 = arith.subf %29, %41 : vector<8x256xf32>
    %cst_8 = arith.constant 9.99999974E-6 : f32
    %43 = vector.broadcast %cst_8 : f32 to vector<1x256xf32>
    %44 = arith.addf %40, %43 : vector<1x256xf32>
    %45 = math.rsqrt %44 : vector<1x256xf32>
    %46 = vector.broadcast %45 : vector<1x256xf32> to vector<8x256xf32>
    %47 = arith.mulf %42, %46 : vector<8x256xf32>
    %48 = vector.broadcast %8 : vector<8x1xf32> to vector<8x256xf32>
    %49 = arith.mulf %47, %48 : vector<8x256xf32>
    %50 = vector.broadcast %9 : vector<8x1xf32> to vector<8x256xf32>
    %51 = arith.addf %49, %50 : vector<8x256xf32>
    %cst_9 = arith.constant 0.000000e+00 : f32
    %52 = vector.broadcast %cst_9 : f32 to vector<8x256xf32>
    %53 = arith.maximumf %51, %52 : vector<8x256xf32>
    %cst_10 = arith.constant dense<0.000000e+00> : vector<8x256xf32>
    %54 = tpu.matmul %3, %53, %cst_10 {dimension_numbers = #tpu.dot_dimension_numbers<[1], [0], [0], [1], [0, 0, 1, 1], [], []>} : vector<8x8xf32>, vector<8x256xf32>, vector<8x256xf32> -> vector<8x256xf32>
    %55 = vector.broadcast %10 : vector<8x1xf32> to vector<8x256xf32>
    %56 = arith.addf %54, %55 : vector<8x256xf32>
    %cst_11 = arith.constant dense<0.000000e+00> : vector<256xf32>
    %57 = vector.multi_reduction <add>, %56, %cst_11 [0] : vector<8x256xf32> to vector<256xf32>
    %58 = vector.shape_cast %57 : vector<256xf32> to vector<1x256xf32>
    %cst_12 = arith.constant 8.000000e+00 : f32
    %59 = vector.broadcast %cst_12 : f32 to vector<1x256xf32>
    %60 = arith.divf %58, %59 : vector<1x256xf32>
    %61 = vector.broadcast %60 : vector<1x256xf32> to vector<8x256xf32>
    %62 = arith.subf %56, %61 : vector<8x256xf32>
    %63 = arith.mulf %62, %62 : vector<8x256xf32>
    %cst_13 = arith.constant dense<0.000000e+00> : vector<256xf32>
    %64 = vector.multi_reduction <add>, %63, %cst_13 [0] : vector<8x256xf32> to vector<256xf32>
    %65 = vector.shape_cast %64 : vector<256xf32> to vector<1x256xf32>
    %cst_14 = arith.constant 8.000000e+00 : f32
    %66 = vector.broadcast %cst_14 : f32 to vector<1x256xf32>
    %67 = arith.divf %65, %66 : vector<1x256xf32>
    %68 = vector.broadcast %60 : vector<1x256xf32> to vector<8x256xf32>
    %69 = arith.subf %56, %68 : vector<8x256xf32>
    %cst_15 = arith.constant 9.99999974E-6 : f32
    %70 = vector.broadcast %cst_15 : f32 to vector<1x256xf32>
    %71 = arith.addf %67, %70 : vector<1x256xf32>
    %72 = math.rsqrt %71 : vector<1x256xf32>
    %73 = vector.broadcast %72 : vector<1x256xf32> to vector<8x256xf32>
    %74 = arith.mulf %69, %73 : vector<8x256xf32>
    %75 = vector.broadcast %11 : vector<8x1xf32> to vector<8x256xf32>
    %76 = arith.mulf %74, %75 : vector<8x256xf32>
    %77 = vector.broadcast %12 : vector<8x1xf32> to vector<8x256xf32>
    %78 = arith.addf %76, %77 : vector<8x256xf32>
    %cst_16 = arith.constant 0.000000e+00 : f32
    %79 = vector.broadcast %cst_16 : f32 to vector<8x256xf32>
    %80 = arith.maximumf %78, %79 : vector<8x256xf32>
    %cst_17 = arith.constant dense<0.000000e+00> : vector<8x256xf32>
    %81 = tpu.matmul %4, %80, %cst_17 {dimension_numbers = #tpu.dot_dimension_numbers<[1], [0], [0], [1], [0, 0, 1, 1], [], []>} : vector<8x8xf32>, vector<8x256xf32>, vector<8x256xf32> -> vector<8x256xf32>
    %82 = vector.broadcast %13 : vector<8x1xf32> to vector<8x256xf32>
    %83 = arith.addf %81, %82 : vector<8x256xf32>
    %cst_18 = arith.constant dense<0.000000e+00> : vector<256xf32>
    %84 = vector.multi_reduction <add>, %83, %cst_18 [0] : vector<8x256xf32> to vector<256xf32>
    %85 = vector.shape_cast %84 : vector<256xf32> to vector<1x256xf32>
    %cst_19 = arith.constant 8.000000e+00 : f32
    %86 = vector.broadcast %cst_19 : f32 to vector<1x256xf32>
    %87 = arith.divf %85, %86 : vector<1x256xf32>
    %88 = vector.broadcast %87 : vector<1x256xf32> to vector<8x256xf32>
    %89 = arith.subf %83, %88 : vector<8x256xf32>
    %90 = arith.mulf %89, %89 : vector<8x256xf32>
    %cst_20 = arith.constant dense<0.000000e+00> : vector<256xf32>
    %91 = vector.multi_reduction <add>, %90, %cst_20 [0] : vector<8x256xf32> to vector<256xf32>
    %92 = vector.shape_cast %91 : vector<256xf32> to vector<1x256xf32>
    %cst_21 = arith.constant 8.000000e+00 : f32
    %93 = vector.broadcast %cst_21 : f32 to vector<1x256xf32>
    %94 = arith.divf %92, %93 : vector<1x256xf32>
    %95 = vector.broadcast %87 : vector<1x256xf32> to vector<8x256xf32>
    %96 = arith.subf %83, %95 : vector<8x256xf32>
    %cst_22 = arith.constant 9.99999974E-6 : f32
    %97 = vector.broadcast %cst_22 : f32 to vector<1x256xf32>
    %98 = arith.addf %94, %97 : vector<1x256xf32>
    %99 = math.rsqrt %98 : vector<1x256xf32>
    %100 = vector.broadcast %99 : vector<1x256xf32> to vector<8x256xf32>
    %101 = arith.mulf %96, %100 : vector<8x256xf32>
    %102 = vector.broadcast %14 : vector<8x1xf32> to vector<8x256xf32>
    %103 = arith.mulf %101, %102 : vector<8x256xf32>
    %104 = vector.broadcast %15 : vector<8x1xf32> to vector<8x256xf32>
    %105 = arith.addf %103, %104 : vector<8x256xf32>
    %cst_23 = arith.constant 0.000000e+00 : f32
    %106 = vector.broadcast %cst_23 : f32 to vector<8x256xf32>
    %107 = arith.maximumf %105, %106 : vector<8x256xf32>
    %cst_24 = arith.constant dense<0.000000e+00> : vector<4x256xf32>
    %108 = tpu.matmul %5, %107, %cst_24 {dimension_numbers = #tpu.dot_dimension_numbers<[1], [0], [0], [1], [0, 0, 1, 1], [], []>} : vector<4x8xf32>, vector<8x256xf32>, vector<4x256xf32> -> vector<4x256xf32>
    %109 = vector.broadcast %16 : vector<4x1xf32> to vector<4x256xf32>
    %110 = arith.addf %108, %109 : vector<4x256xf32>
    %c0_25 = arith.constant 0 : index
    %c0_26 = arith.constant 0 : index
    %111 = vector.load %arg4[%c0_25, %c0_26] : memref<4x256xf32, #tpu.memory_space<vmem>>, vector<4x256xf32>
    tpu.vector_store %arg4[%c0_25, %c0_26], %110 {strides = array<i32>} : memref<4x256xf32, #tpu.memory_space<vmem>>, vector<4x256xf32>,
    return
  }
  func.func @transform_0(%arg0: i32) -> (i32, i32) {
    %c0_i32 = arith.constant 0 : i32
    %c0_i32_0 = arith.constant 0 : i32
    return %c0_i32, %arg0 : i32, i32
  }
  func.func @transform_1(%arg0: i32) -> (i32, i32) {
    %c0_i32 = arith.constant 0 : i32
    %c0_i32_0 = arith.constant 0 : i32
    %c0_i32_1 = arith.constant 0 : i32
    return %c0_i32, %c0_i32_0 : i32, i32
  }
  func.func @transform_2(%arg0: i32) -> (i32, i32) {
    %c0_i32 = arith.constant 0 : i32
    %c0_i32_0 = arith.constant 0 : i32
    %c0_i32_1 = arith.constant 0 : i32
    return %c0_i32, %c0_i32_0 : i32, i32
  }
  func.func @transform_3(%arg0: i32) -> (i32, i32) {
    %c0_i32 = arith.constant 0 : i32
    %c0_i32_0 = arith.constant 0 : i32
    return %c0_i32, %arg0 : i32, i32
  }
}

</mosaic_0001>

<llo_original>
// kernel: tpu_custom_call.1
$region0: #{tpu_custom_call.1}
  #allocation0 [shape = 'u32[]', space=smem, size = 0x4, offset = 0x4, fixed_abs, tag = 'smem constant byte address 0x4 - core index']
  #allocation1 [shape = 'u32[144,128]{1,0:T(1,128)}', space=vmem, size = 0x12000, scoped, tag = 'internal scratch']
  %s0 = inlined_call_operand.vmem [shape: f32[2,256], index: 0, kind: input, shape index: {}]
  %s1 = inlined_call_operand.vmem [shape: f32[28,8], index: 1, kind: input, shape index: {}]
  %s2 = inlined_call_operand.vmem [shape: f32[8,10], index: 2, kind: input, shape index: {}]
  %s3 = inlined_call_operand.hbm [shape: f32[4,256], index: 3, kind: output, shape index: {}]
  %s4 = sld [smem:[#allocation0]]
  $region22: #{tpu_custom_call.1} parent=0
    _
  %s6 = ssub.s32 1, %s4
  %s7 = scalar_select 0, %s6, %s4
  $region1: #{tpu_custom_call.1} parent=0
    #allocation2 [shape = 'u8[4096]{0}', space=vmem, size = 0x1000, scoped, tag = 'output window, operand 0, single buffered']
    #allocation3 [shape = 's32[1]{0}', space=sflag, size = 0x4, scoped, tag = 'scoped memory for tpu_custom_call.1']
    %8 = vsyncpa [#allocation3], 0
    // Predicated region
    $region2: #{tpu_custom_call.1} parent=1 // pred_check
      _
    $region3: #{tpu_custom_call.1} parent=1 // pred_check_branch
      %10 = sbr.rel (0) target = $region5
    $region4: #{tpu_custom_call.1} parent=1 // pred_region
      _
    $region5: #{tpu_custom_call.1} parent=1 // pred_fallthru
      _
    // Predicated region
    $region6: #{tpu_custom_call.1} parent=1 // pred_check
      _
    $region7: #{tpu_custom_call.1} parent=1 // pred_check_branch
      %12 = sbr.rel (0) target = $region9
    $region8: #{tpu_custom_call.1} parent=1 // pred_region
      _
    $region9: #{tpu_custom_call.1} parent=1 // pred_fallthru
      _
    // Predicated region
    $region10: #{tpu_custom_call.1} parent=1 // pred_check
      _
    $region11: #{tpu_custom_call.1} parent=1 // pred_check_branch
      %14 = sbr.rel (0) target = $region13
    $region12: #{tpu_custom_call.1} parent=1 // pred_region
      _
    $region13: #{tpu_custom_call.1} parent=1 // pred_fallthru
      _
    %v15 = vld [vmem:[%s0] sm:$0xf]
    %v16 = vld [vmem:[%s1] sm:$0xff]
    %v17 = vld [vmem:[%s1 + $0x8] sm:$0xff]
    %v18 = vld [vmem:[%s1 + $0x10] sm:$0xff]
    %v19 = vld [vmem:[%s1 + $0x18] sm:$0xf]
    %v20 = vld [vmem:[%s2] sm:$0xff]
    %22 = vset.pattern.permute.xlu0 0
    %23 = vperm.xlu0 %22, %v16
    %v24 = vpop.permute.xlu0 %23
    %v27 = vlaneseq
    %v28 = vshrl.u32 %v27, 7
    %v29 = vsub.s32 0, %v28
    %v30 = vrot.slane %v15, %v29
    %v31 = vlaneseq
    %v32 = vshrl.u32 %v31, 7
    %v33 = vsub.s32 2, %v32
    %v34 = vrot.slane %v15, %v33
    %v37 = vlaneseq
    %v38 = vshrl.u32 %v37, 7
    %v39 = vsub.s32 0, %v38
    %v40 = vrot.slane %v30, %v39
    %v41 = vlaneseq
    %v42 = vshrl.u32 %v41, 7
    %v43 = vsub.s32 0, %v42
    %v44 = vrot.slane %v34, %v43
    %v45 = vmul.f32 %v24, %v40
    %v46 = vmul.f32 %v24, %v44
    %47 = vset.pattern.permute.xlu0 1
    %48 = vperm.xlu0 %47, %v16
    %v49 = vpop.permute.xlu0 %48
    %v51 = vlaneseq
    %v52 = vshrl.u32 %v51, 7
    %v53 = vsub.s32 1, %v52
    %v54 = vrot.slane %v15, %v53
    %v55 = vlaneseq
    %v56 = vshrl.u32 %v55, 7
    %v57 = vsub.s32 3, %v56
    %v58 = vrot.slane %v15, %v57
    %v61 = vlaneseq
    %v62 = vshrl.u32 %v61, 7
    %v63 = vsub.s32 1, %v62
    %v64 = vrot.slane %v54, %v63
    %v65 = vlaneseq
    %v66 = vshrl.u32 %v65, 7
    %v67 = vsub.s32 1, %v66
    %v68 = vrot.slane %v58, %v67
    %v69 = vmul.f32 %v49, %v64
    %v70 = vmul.f32 %v49, %v68
    %v71 = vadd.f32 %v45, %v69
    %v72 = vadd.f32 %v46, %v70
    %74 = vset.pattern.permute.xlu0 0
    %75 = vperm.xlu0 %74, %v20
    %v76 = vpop.permute.xlu0 %75
    %v78 = vadd.f32 %v71, %v76
    %v79 = vadd.f32 %v72, %v76
    %v80 = vrot.slane %v78, 4
    %v81 = vadd.f32 %v78, %v80
    %v82 = vrot.slane %v81, 2
    %v83 = vadd.f32 %v81, %v82
    %v84 = vrot.slane %v83, 1
    %v85 = vadd.f32 %v83, %v84
    %v86 = vrot.slane %v79, 4
    %v87 = vadd.f32 %v79, %v86
    %v88 = vrot.slane %v87, 2
    %v89 = vadd.f32 %v87, %v88
    %v90 = vrot.slane %v89, 1
    %v91 = vadd.f32 %v89, %v90
    %v92 = vrcp.pop 8.0
    %v93 = vmul.f32 %v85, %v92
    %v94 = vmul.f32 %v91, %v92
    %v95 = vsub.f32 %v78, %v93
    %v96 = vsub.f32 %v79, %v94
    %v97 = vmul.f32 %v95, %v95
    %v98 = vmul.f32 %v96, %v96
    %v99 = vrot.slane %v97, 4
    %v100 = vadd.f32 %v97, %v99
    %v101 = vrot.slane %v100, 2
    %v102 = vadd.f32 %v100, %v101
    %v103 = vrot.slane %v102, 1
    %v104 = vadd.f32 %v102, %v103
    %v105 = vrot.slane %v98, 4
    %v106 = vadd.f32 %v98, %v105
    %v107 = vrot.slane %v106, 2
    %v108 = vadd.f32 %v106, %v107
    %v109 = vrot.slane %v108, 1
    %v110 = vadd.f32 %v108, %v109
    %v111 = vmul.f32 %v104, %v92
    %v112 = vmul.f32 %v110, %v92
    %v113 = vadd.f32 %v111, 1e-05
    %v114 = vadd.f32 %v112, 1e-05
    %v115 = vrsqrt.pop %v113
    %v116 = vrsqrt.pop %v114
    %v117 = vmul.f32 %v95, %v115
    %v118 = vmul.f32 %v96, %v116
    %119 = vset.pattern.permute.xlu0 1
    %120 = vperm.xlu0 %119, %v20
    %v121 = vpop.permute.xlu0 %120
    %v123 = vmul.f32 %v117, %v121
    %v124 = vmul.f32 %v118, %v121
    %125 = vset.pattern.permute.xlu0 2
    %126 = vperm.xlu0 %125, %v20
    %v127 = vpop.permute.xlu0 %126
    %v129 = vadd.f32 %v123, %v127
    %v130 = vadd.f32 %v124, %v127
    %v131 = vmax.f32 %v129, 0.0
    %v132 = vmax.f32 %v130, 0.0
    %133 = vset.pattern.permute.xlu0 3
    %134 = vperm.xlu0 %133, %v20
    %v135 = vpop.permute.xlu0 %134
    %vm137 = vcmask 64512
    %v139 = vsel %vm137, %v17, 0
    %141 = vmatprep.subr.mxu0 0.0
    %142 = vmatpush1.msra.mxu0 0.0
    %143 = vmatprep.subr.mxu0 0.0
    %144 = vmatpush1.msra.mxu0 0.0
    %145 = vmatprep.subr.mxu0 0.0
    %146 = vmatpush1.msra.mxu0 0.0
    %147 = vmatprep.subr.mxu0 0.0
    %148 = vmatpush1.msra.mxu0 0.0
    %149 = vmatprep.subr.mxu0 0.0
    %150 = vmatpush1.msra.mxu0 0.0
    %151 = vmatprep.subr.mxu0 0.0
    %152 = vmatpush1.msra.mxu0 0.0
    %153 = vmatprep.subr.mxu0 0.0
    %154 = vmatpush1.msra.mxu0 0.0
    %155 = vmatprep.subr.mxu0 0.0
    %156 = vmatpush1.msra.mxu0 0.0
    %157 = vmatprep.subr.mxu0 0.0
    %158 = vmatpush1.msra.mxu0 0.0
    %159 = vmatprep.subr.mxu0 0.0
    %160 = vmatpush1.msra.mxu0 0.0
    %161 = vmatprep.subr.mxu0 0.0
    %162 = vmatpush1.msra.mxu0 0.0
    %163 = vmatprep.subr.mxu0 0.0
    %164 = vmatpush1.msra.mxu0 0.0
    %165 = vmatprep.subr.mxu0 0.0
    %166 = vmatpush1.msra.mxu0 0.0
    %167 = vmatprep.subr.mxu0 0.0
    %168 = vmatpush1.msra.mxu0 0.0
    %169 = vmatprep.subr.mxu0 0.0
    %170 = vmatpush1.msra.mxu0 0.0
    %171 = vmatprep.subr.mxu0 %v132
    %172 = vmatpush1.msra.mxu0 %v131
    %173 = vmatprep.subr.mxu0 0.0
    %174 = vmatpush2.msra.mxu0 0.0
    %175 = vmatprep.subr.mxu0 0.0
    %176 = vmatpush2.msra.mxu0 0.0
    %177 = vmatprep.subr.mxu0 0.0
    %178 = vmatpush2.msra.mxu0 0.0
    %179 = vmatprep.subr.mxu0 0.0
    %180 = vmatpush2.msra.mxu0 0.0
    %181 = vmatprep.subr.mxu0 0.0
    %182 = vmatpush2.msra.mxu0 0.0
    %183 = vmatprep.subr.mxu0 0.0
    %184 = vmatpush2.msra.mxu0 0.0
    %185 = vmatprep.subr.mxu0 0.0
    %186 = vmatpush2.msra.mxu0 0.0
    %187 = vmatprep.subr.mxu0 0.0
    %188 = vmatpush2.msra.mxu0 0.0
    %189 = vmatprep.subr.mxu0 0.0
    %190 = vmatpush2.msra.mxu0 0.0
    %191 = vmatprep.subr.mxu0 0.0
    %192 = vmatpush2.msra.mxu0 0.0
    %193 = vmatprep.subr.mxu0 0.0
    %194 = vmatpush2.msra.mxu0 0.0
    %195 = vmatprep.subr.mxu0 0.0
    %196 = vmatpush2.msra.mxu0 0.0
    %197 = vmatprep.subr.mxu0 0.0
    %198 = vmatpush2.msra.mxu0 0.0
    %199 = vmatprep.subr.mxu0 0.0
    %200 = vmatpush2.msra.mxu0 0.0
    %201 = vmatprep.subr.mxu0 0.0
    %202 = vmatpush2.msra.mxu0 0.0
    %203 = vmatprep.subr.mxu0 0.0
    %204 = vmatpush2.msra.mxu0 0.0
    %205 = vmatprep.mubr.f32.mxu0 0.0
    %206 = vmatmul.mubr.f32.gmra.mxu0 %v139
    %v207 = vpop.f32.mrf.mxu0
    %v208 = vadd.f32 %v135, %v207
    %v209 = vpop.f32.mrf.mxu0
    %v210 = vadd.f32 %v135, %v209
    %211 = vdwg.mxu0
    %v212 = vrot.slane %v208, 4
    %v213 = vadd.f32 %v208, %v212
    %v214 = vrot.slane %v213, 2
    %v215 = vadd.f32 %v213, %v214
    %v216 = vrot.slane %v215, 1
    %v217 = vadd.f32 %v215, %v216
    %v218 = vrot.slane %v210, 4
    %v219 = vadd.f32 %v210, %v218
    %v220 = vrot.slane %v219, 2
    %v221 = vadd.f32 %v219, %v220
    %v222 = vrot.slane %v221, 1
    %v223 = vadd.f32 %v221, %v222
    %v224 = vmul.f32 %v217, %v92
    %v225 = vmul.f32 %v223, %v92
    %v226 = vsub.f32 %v208, %v224
    %v227 = vsub.f32 %v210, %v225
    %v228 = vmul.f32 %v226, %v226
    %v229 = vmul.f32 %v227, %v227
    %v230 = vrot.slane %v228, 4
    %v231 = vadd.f32 %v228, %v230
    %v232 = vrot.slane %v231, 2
    %v233 = vadd.f32 %v231, %v232
    %v234 = vrot.slane %v233, 1
    %v235 = vadd.f32 %v233, %v234
    %v236 = vrot.slane %v229, 4
    %v237 = vadd.f32 %v229, %v236
    %v238 = vrot.slane %v237, 2
    %v239 = vadd.f32 %v237, %v238
    %v240 = vrot.slane %v239, 1
    %v241 = vadd.f32 %v239, %v240
    %v242 = vmul.f32 %v235, %v92
    %v243 = vmul.f32 %v241, %v92
    %v244 = vadd.f32 %v242, 1e-05
    %v245 = vadd.f32 %v243, 1e-05
    %v246 = vrsqrt.pop %v244
    %v247 = vrsqrt.pop %v245
    %v248 = vmul.f32 %v226, %v246
    %v249 = vmul.f32 %v227, %v247
    %250 = vset.pattern.permute.xlu0 4
    %251 = vperm.xlu0 %250, %v20
    %v252 = vpop.permute.xlu0 %251
    %v254 = vmul.f32 %v248, %v252
    %v255 = vmul.f32 %v249, %v252
    %256 = vset.pattern.permute.xlu0 5
    %257 = vperm.xlu0 %256, %v20
    %v258 = vpop.permute.xlu0 %257
    %v260 = vadd.f32 %v254, %v258
    %v261 = vadd.f32 %v255, %v258
    %v262 = vmax.f32 %v260, 0.0
    %v263 = vmax.f32 %v261, 0.0
    %264 = vset.pattern.permute.xlu0 6
    %265 = vperm.xlu0 %264, %v20
    %v266 = vpop.permute.xlu0 %265
    %v269 = vsel %vm137, %v18, 0
    %271 = vmatprep.subr.mxu0 0.0
    %272 = vmatpush1.msra.mxu0 0.0
    %273 = vmatprep.subr.mxu0 0.0
    %274 = vmatpush1.msra.mxu0 0.0
    %275 = vmatprep.subr.mxu0 0.0
    %276 = vmatpush1.msra.mxu0 0.0
    %277 = vmatprep.subr.mxu0 0.0
    %278 = vmatpush1.msra.mxu0 0.0
    %279 = vmatprep.subr.mxu0 0.0
    %280 = vmatpush1.msra.mxu0 0.0
    %281 = vmatprep.subr.mxu0 0.0
    %282 = vmatpush1.msra.mxu0 0.0
    %283 = vmatprep.subr.mxu0 0.0
    %284 = vmatpush1.msra.mxu0 0.0
    %285 = vmatprep.subr.mxu0 0.0
    %286 = vmatpush1.msra.mxu0 0.0
    %287 = vmatprep.subr.mxu0 0.0
    %288 = vmatpush1.msra.mxu0 0.0
    %289 = vmatprep.subr.mxu0 0.0
    %290 = vmatpush1.msra.mxu0 0.0
    %291 = vmatprep.subr.mxu0 0.0
    %292 = vmatpush1.msra.mxu0 0.0
    %293 = vmatprep.subr.mxu0 0.0
    %294 = vmatpush1.msra.mxu0 0.0
    %295 = vmatprep.subr.mxu0 0.0
    %296 = vmatpush1.msra.mxu0 0.0
    %297 = vmatprep.subr.mxu0 0.0
    %298 = vmatpush1.msra.mxu0 0.0
    %299 = vmatprep.subr.mxu0 0.0
    %300 = vmatpush1.msra.mxu0 0.0
    %301 = vmatprep.subr.mxu0 %v263
    %302 = vmatpush1.msra.mxu0 %v262
    %303 = vmatprep.subr.mxu0 0.0
    %304 = vmatpush2.msra.mxu0 0.0
    %305 = vmatprep.subr.mxu0 0.0
    %306 = vmatpush2.msra.mxu0 0.0
    %307 = vmatprep.subr.mxu0 0.0
    %308 = vmatpush2.msra.mxu0 0.0
    %309 = vmatprep.subr.mxu0 0.0
    %310 = vmatpush2.msra.mxu0 0.0
    %311 = vmatprep.subr.mxu0 0.0
    %312 = vmatpush2.msra.mxu0 0.0
    %313 = vmatprep.subr.mxu0 0.0
    %314 = vmatpush2.msra.mxu0 0.0
    %315 = vmatprep.subr.mxu0 0.0
    %316 = vmatpush2.msra.mxu0 0.0
    %317 = vmatprep.subr.mxu0 0.0
    %318 = vmatpush2.msra.mxu0 0.0
    %319 = vmatprep.subr.mxu0 0.0
    %320 = vmatpush2.msra.mxu0 0.0
    %321 = vmatprep.subr.mxu0 0.0
    %322 = vmatpush2.msra.mxu0 0.0
    %323 = vmatprep.subr.mxu0 0.0
    %324 = vmatpush2.msra.mxu0 0.0
    %325 = vmatprep.subr.mxu0 0.0
    %326 = vmatpush2.msra.mxu0 0.0
    %327 = vmatprep.subr.mxu0 0.0
    %328 = vmatpush2.msra.mxu0 0.0
    %329 = vmatprep.subr.mxu0 0.0
    %330 = vmatpush2.msra.mxu0 0.0
    %331 = vmatprep.subr.mxu0 0.0
    %332 = vmatpush2.msra.mxu0 0.0
    %333 = vmatprep.subr.mxu0 0.0
    %334 = vmatpush2.msra.mxu0 0.0
    %335 = vmatprep.mubr.f32.mxu0 0.0
    %336 = vmatmul.mubr.f32.gmra.mxu0 %v269
    %v337 = vpop.f32.mrf.mxu0
    %v338 = vadd.f32 %v266, %v337
    %v339 = vpop.f32.mrf.mxu0
    %v340 = vadd.f32 %v266, %v339
    %341 = vdwg.mxu0
    %v342 = vrot.slane %v338, 4
    %v343 = vadd.f32 %v338, %v342
    %v344 = vrot.slane %v343, 2
    %v345 = vadd.f32 %v343, %v344
    %v346 = vrot.slane %v345, 1
    %v347 = vadd.f32 %v345, %v346
    %v348 = vrot.slane %v340, 4
    %v349 = vadd.f32 %v340, %v348
    %v350 = vrot.slane %v349, 2
    %v351 = vadd.f32 %v349, %v350
    %v352 = vrot.slane %v351, 1
    %v353 = vadd.f32 %v351, %v352
    %v354 = vmul.f32 %v347, %v92
    %v355 = vmul.f32 %v353, %v92
    %v356 = vsub.f32 %v338, %v354
    %v357 = vsub.f32 %v340, %v355
    %v358 = vmul.f32 %v356, %v356
    %v359 = vmul.f32 %v357, %v357
    %v360 = vrot.slane %v358, 4
    %v361 = vadd.f32 %v358, %v360
    %v362 = vrot.slane %v361, 2
    %v363 = vadd.f32 %v361, %v362
    %v364 = vrot.slane %v363, 1
    %v365 = vadd.f32 %v363, %v364
    %v366 = vrot.slane %v359, 4
    %v367 = vadd.f32 %v359, %v366
    %v368 = vrot.slane %v367, 2
    %v369 = vadd.f32 %v367, %v368
    %v370 = vrot.slane %v369, 1
    %v371 = vadd.f32 %v369, %v370
    %v372 = vmul.f32 %v365, %v92
    %v373 = vmul.f32 %v371, %v92
    %v374 = vadd.f32 %v372, 1e-05
    %v375 = vadd.f32 %v373, 1e-05
    %v376 = vrsqrt.pop %v374
    %v377 = vrsqrt.pop %v375
    %v378 = vmul.f32 %v356, %v376
    %v379 = vmul.f32 %v357, %v377
    %380 = vset.pattern.permute.xlu0 7
    %381 = vperm.xlu0 %380, %v20
    %v382 = vpop.permute.xlu0 %381
    %v384 = vmul.f32 %v378, %v382
    %v385 = vmul.f32 %v379, %v382
    %386 = vset.pattern.permute.xlu0 8
    %387 = vperm.xlu0 %386, %v20
    %v388 = vpop.permute.xlu0 %387
    %v390 = vadd.f32 %v384, %v388
    %v391 = vadd.f32 %v385, %v388
    %v392 = vmax.f32 %v390, 0.0
    %v393 = vmax.f32 %v391, 0.0
    %394 = vset.pattern.permute.xlu0 9
    %395 = vperm.xlu0 %394, %v20
    %v396 = vpop.permute.xlu0 %395
    %v399 = vsel %vm137, %v19, 0
    %401 = vmatprep.subr.mxu0 0.0
    %402 = vmatpush1.msra.mxu0 0.0
    %403 = vmatprep.subr.mxu0 0.0
    %404 = vmatpush1.msra.mxu0 0.0
    %405 = vmatprep.subr.mxu0 0.0
    %406 = vmatpush1.msra.mxu0 0.0
    %407 = vmatprep.subr.mxu0 0.0
    %408 = vmatpush1.msra.mxu0 0.0
    %409 = vmatprep.subr.mxu0 0.0
    %410 = vmatpush1.msra.mxu0 0.0
    %411 = vmatprep.subr.mxu0 0.0
    %412 = vmatpush1.msra.mxu0 0.0
    %413 = vmatprep.subr.mxu0 0.0
    %414 = vmatpush1.msra.mxu0 0.0
    %415 = vmatprep.subr.mxu0 0.0
    %416 = vmatpush1.msra.mxu0 0.0
    %417 = vmatprep.subr.mxu0 0.0
    %418 = vmatpush1.msra.mxu0 0.0
    %419 = vmatprep.subr.mxu0 0.0
    %420 = vmatpush1.msra.mxu0 0.0
    %421 = vmatprep.subr.mxu0 0.0
    %422 = vmatpush1.msra.mxu0 0.0
    %423 = vmatprep.subr.mxu0 0.0
    %424 = vmatpush1.msra.mxu0 0.0
    %425 = vmatprep.subr.mxu0 0.0
    %426 = vmatpush1.msra.mxu0 0.0
    %427 = vmatprep.subr.mxu0 0.0
    %428 = vmatpush1.msra.mxu0 0.0
    %429 = vmatprep.subr.mxu0 0.0
    %430 = vmatpush1.msra.mxu0 0.0
    %431 = vmatprep.subr.mxu0 %v393
    %432 = vmatpush1.msra.mxu0 %v392
    %433 = vmatprep.subr.mxu0 0.0
    %434 = vmatpush2.msra.mxu0 0.0
    %435 = vmatprep.subr.mxu0 0.0
    %436 = vmatpush2.msra.mxu0 0.0
    %437 = vmatprep.subr.mxu0 0.0
    %438 = vmatpush2.msra.mxu0 0.0
    %439 = vmatprep.subr.mxu0 0.0
    %440 = vmatpush2.msra.mxu0 0.0
    %441 = vmatprep.subr.mxu0 0.0
    %442 = vmatpush2.msra.mxu0 0.0
    %443 = vmatprep.subr.mxu0 0.0
    %444 = vmatpush2.msra.mxu0 0.0
    %445 = vmatprep.subr.mxu0 0.0
    %446 = vmatpush2.msra.mxu0 0.0
    %447 = vmatprep.subr.mxu0 0.0
    %448 = vmatpush2.msra.mxu0 0.0
    %449 = vmatprep.subr.mxu0 0.0
    %450 = vmatpush2.msra.mxu0 0.0
    %451 = vmatprep.subr.mxu0 0.0
    %452 = vmatpush2.msra.mxu0 0.0
    %453 = vmatprep.subr.mxu0 0.0
    %454 = vmatpush2.msra.mxu0 0.0
    %455 = vmatprep.subr.mxu0 0.0
    %456 = vmatpush2.msra.mxu0 0.0
    %457 = vmatprep.subr.mxu0 0.0
    %458 = vmatpush2.msra.mxu0 0.0
    %459 = vmatprep.subr.mxu0 0.0
    %460 = vmatpush2.msra.mxu0 0.0
    %461 = vmatprep.subr.mxu0 0.0
    %462 = vmatpush2.msra.mxu0 0.0
    %463 = vmatprep.subr.mxu0 0.0
    %464 = vmatpush2.msra.mxu0 0.0
    %465 = vmatprep.mubr.f32.mxu0 0.0
    %466 = vmatmul.mubr.f32.gmra.mxu0 %v399
    %v467 = vpop.f32.mrf.mxu0
    %v468 = vadd.f32 %v396, %v467
    %v469 = vpop.f32.mrf.mxu0
    %v470 = vadd.f32 %v396, %v469
    %471 = vdwg.mxu0
    %v474 = vcombine.low %v468, %v470
    %476 = vst [vmem:[#allocation2] sm:$0xff] %v474
    // Predicated region
    $region14: #{tpu_custom_call.1} parent=1 // pred_check
      _
    $region15: #{tpu_custom_call.1} parent=1 // pred_check_branch
      %478 = sbr.rel (0) target = $region17
    $region16: #{tpu_custom_call.1} parent=1 // pred_region
      %s480 = ssub.s32 128, 128
      %481 = vsyncadd [#allocation3], %s480
      %s483 = sshll.u32 [#allocation2], 4
      %s484 = int_to_ptr.vmem [resolvable:$true] %s483
      %486 = dma.vmem_to_hbm [thread:$0]  %s484, 128, %s3, [#allocation3]
    $region17: #{tpu_custom_call.1} parent=1 // pred_fallthru
      _
    // Predicated region
    $region18: #{tpu_custom_call.1} parent=1 // pred_check
      _
    $region19: #{tpu_custom_call.1} parent=1 // pred_check_branch
      %488 = sbr.rel (0) target = $region21
    $region20: #{tpu_custom_call.1} parent=1 // pred_region
      %489 = dma.done [#allocation3], 128
    $region21: #{tpu_custom_call.1} parent=1 // pred_fallthru
      _
    %490 = vsyncpa [#allocation3], 1

</llo_original>
